<compile_context>
chip_gen: v7x
topology: tpu7x:2x2x1
jax: 0.10.0
libtpu: 0.0.40
codegen_flags: <defaults>
</compile_context>

<pallas_src>
import math
import numpy as np
import jax
import jax.numpy as jnp
from jax.experimental import pallas as pl
from jax.experimental.pallas import tpu as pltpu


def _round_up(x: int, m: int) -> int:
    return ((x + m - 1) // m) * m


# ---------------------------------------------------------------------------
# Host-side glue: PIL-style antialiased bilinear resize expressed as factors
# ---------------------------------------------------------------------------
def _aa_bilinear_weights(in_size: int, out_size: int) -> np.ndarray:
    """Row-stochastic (out_size, in_size) matrix matching
    F.interpolate(mode='bilinear', align_corners=False, antialias=True)."""
    scale = in_size / out_size
    support = max(scale, 1.0)             # bilinear filter support * filterscale
    invscale = 1.0 / max(scale, 1.0)
    W = np.zeros((out_size, in_size), dtype=np.float64)
    for i in range(out_size):
        center = scale * (i + 0.5)
        xmin = max(int(center - support + 0.5), 0)
        xmax = min(int(center + support + 0.5), in_size)
        xs = np.arange(xmin, xmax, dtype=np.float64)
        w = 1.0 - np.abs((xs - center + 0.5) * invscale)
        w = np.maximum(w, 0.0)
        total = w.sum()
        if total > 0:
            w = w / total
        W[i, xmin:xmax] = w
    return W.astype(np.float32)
    # TODO(synk): validate against torch for strong downsampling (h or w << pos_size).


def build_resize_factors(spatial_shapes: np.ndarray, pos_size: int, max_length: int):
    """Tiny per-example separable-resize factors A, B of shape (Bsz, max_length, pos_size)
    with A[b,i] = Wh[i//w], B[b,i] = Ww[i%w] (pad rows copy row 0), such that
    resized_pos[b, i] == sum_{p,q} A[b,i,p] * B[b,i,q] * pos_grid[p, q, :]."""
    # TODO(synk): a jittable JAX builder would avoid the host sync on traced spatial_shapes.
    Bsz = spatial_shapes.shape[0]
    A = np.zeros((Bsz, max_length, pos_size), dtype=np.float32)
    Bm = np.zeros((Bsz, max_length, pos_size), dtype=np.float32)
    for b in range(Bsz):
        h, w = int(spatial_shapes[b, 0]), int(spatial_shapes[b, 1])
        n = h * w
        assert 0 < n <= max_length, "spatial_shapes imply more patches than max_length"
        Wh = _aa_bilinear_weights(pos_size, h)          # (h, P)
        Ww = _aa_bilinear_weights(pos_size, w)          # (w, P)
        idx = np.arange(n)
        A[b, :n] = Wh[idx // w]
        Bm[b, :n] = Ww[idx % w]
        A[b, n:] = Wh[0]                                 # pad rows use resized row 0
        Bm[b, n:] = Ww[0]
    return A, Bm


def build_resize_matrices(spatial_shapes: np.ndarray, pos_size: int, max_length: int) -> np.ndarray:
    """Dense (B, L, NP) interpolation matrices (REFERENCE ONLY; not used by the kernel)."""
    Bsz = spatial_shapes.shape[0]
    num_patches = pos_size * pos_size
    M = np.zeros((Bsz, max_length, num_patches), dtype=np.float32)
    for b in range(Bsz):
        h, w = int(spatial_shapes[b, 0]), int(spatial_shapes[b, 1])
        Wh = _aa_bilinear_weights(pos_size, h)
        Ww = _aa_bilinear_weights(pos_size, w)
        K = np.einsum("hp,wq->hwpq", Wh, Ww).reshape(h * w, num_patches)
        M[b, : h * w] = K
        M[b, h * w:] = K[0]
    return M


# ---------------------------------------------------------------------------
# Pallas kernel: fused patch projection + positional resize/pad + bias add
# ---------------------------------------------------------------------------
def _embed_kernel(pv_ref, a_ref, b_ref, w_ref, pe_ref, rh_ref, rw_ref, bias_ref, o_ref):
    # pv_ref  : (1, TL, DinP) streamed pixel tile (source dtype; cast in-kernel)
    # a_ref   : (1, TL, P)    streamed height resize factor (compute dtype)
    # b_ref   : (1, TL, P)    streamed width  resize factor (compute dtype)
    # w_ref   : (DinP, E)     resident linear weight (transposed, K-padded)
    # pe_ref  : (NP, E)       resident positional table (NP = P*P)
    # rh_ref  : (P, NP)       resident one-hot expansion (col // P)
    # rw_ref  : (P, NP)       resident one-hot expansion (col %  P)
    # bias_ref: (1, E)        resident f32 bias
    # o_ref   : (1, TL, E)
    cdt = w_ref.dtype
    pv = pv_ref[0].astype(cdt)
    acc = jnp.dot(pv, w_ref[...], preferred_element_type=jnp.float32)          # (TL, E)
    # Reconstruct the interpolation-matrix tile from the rank-1 factors:
    # m[l, p*P + q] = A[l, p] * B[l, q]   (tiny MXU expansions + one VPU multiply)
    a_exp = jnp.dot(a_ref[0], rh_ref[...], preferred_element_type=jnp.float32)  # (TL, NP)
    b_exp = jnp.dot(b_ref[0], rw_ref[...], preferred_element_type=jnp.float32)  # (TL, NP)
    m = (a_exp * b_exp).astype(cdt)
    acc = acc + jnp.dot(m, pe_ref[...], preferred_element_type=jnp.float32)
    acc = acc + bias_ref[...]                                                   # f32 bias add
    o_ref[0] = acc.astype(o_ref.dtype)


def _choose_tile_l(L: int, tile_l: int):
    """Pick TL (and padded L) so TL divides L whenever possible -> no L-pad pass."""
    if L <= tile_l:
        return L, L
    if L % tile_l == 0:
        return tile_l, L
    for t in range(tile_l, 7, -1):
        if t % 8 == 0 and L % t == 0:
            return t, L
    return tile_l, _round_up(L, tile_l)


def siglip2_vision_embeddings(pixel_values, lin_w, lin_b, pos_emb, spatial_shapes,
                              *, tile_l=128, compute_dtype=jnp.bfloat16, out_dtype=None):
    """Forward of Siglip2VisionEmbeddings.

    pixel_values   : (B, L, C*P*P)    already-unfolded patches
    lin_w          : (E, C*P*P)       nn.Linear weight (out, in)
    lin_b          : (E,)             nn.Linear bias
    pos_emb        : (NP, E)          nn.Embedding weight, NP = position_embedding_size**2
    spatial_shapes : (B, 2) int       per-image (h, w) in patches, h*w <= L
    out_dtype defaults to compute_dtype (bf16) to halve output HBM traffic; pass
    jnp.float32 to match the PyTorch module's weight dtype exactly.
    """
    B, L, Din = pixel_values.shape
    E = lin_w.shape[0]
    NP = pos_emb.shape[0]
    P = int(round(math.sqrt(NP)))
    assert P * P == NP, "position table must be square"
    if out_dtype is None:
        out_dtype = compute_dtype

    # --- host-side: tiny separable resize factors (B, L, P) x2 -----------------
    A_np, B_np = build_resize_factors(np.asarray(spatial_shapes), P, L)
    A = jnp.asarray(A_np, dtype=compute_dtype)
    Bm = jnp.asarray(B_np, dtype=compute_dtype)

    # Constant one-hot expansion matrices (P, NP): col -> (col // P, col % P).
    cols = np.arange(NP)
    RH = jnp.asarray((cols[None, :] // P == np.arange(P)[:, None]), dtype=compute_dtype)
    RW = jnp.asarray((cols[None, :] % P == np.arange(P)[:, None]), dtype=compute_dtype)

    w_t = lin_w.T.astype(compute_dtype)                 # (Din, E)
    pe_flat = pos_emb.astype(compute_dtype)             # (NP, E)
    bias = lin_b.reshape(1, E).astype(jnp.float32)      # kept separate in f32

    # Gated K-pad (no-op for Din=768); lane-aligns the big contraction when needed.
    Din_p = Din if Din % 128 == 0 else _round_up(Din, 128)
    if Din_p != Din:
        pixel_values = jnp.pad(pixel_values, ((0, 0), (0, 0), (0, Din_p - Din)))
        w_t = jnp.pad(w_t, ((0, Din_p - Din), (0, 0)))

    # L tiling without a pad pass in the common cases.
    TL, L_p = _choose_tile_l(L, tile_l)
    if L_p != L:
        pixel_values = jnp.pad(pixel_values, ((0, 0), (0, L_p - L), (0, 0)))
        A = jnp.pad(A, ((0, 0), (0, L_p - L), (0, 0)))
        Bm = jnp.pad(Bm, ((0, 0), (0, L_p - L), (0, 0)))

    pv_sz = jnp.dtype(pixel_values.dtype).itemsize
    c_sz = jnp.dtype(compute_dtype).itemsize
    o_sz = jnp.dtype(out_dtype).itemsize

    # VMEM: double-buffered streamed tiles + residents + f32 temporaries.
    vmem_need = (2 * TL * Din_p * pv_sz
                 + 2 * 2 * TL * P * c_sz
                 + 2 * TL * E * o_sz
                 + 2 * (Din_p * E + NP * E + 2 * P * NP) * c_sz + 2 * E * 4
                 + 2 * TL * (E + NP) * 4)
    try:
        vmem_cap = int(getattr(pltpu.get_tpu_info(), "vmem_capacity_bytes", 64 << 20))
    except Exception:
        vmem_cap = 64 << 20                               # v7x-safe fallback
    vmem_limit = int(min(max(2 * vmem_need, 8 << 20), (vmem_cap * 7) // 10))

    cost = pl.CostEstimate(
        flops=int(2 * B * L_p * (Din_p * E + NP * E + 2 * P * NP)),
        transcendentals=0,
        bytes_accessed=int(B * L_p * Din_p * pv_sz
                           + 2 * B * L_p * P * c_sz
                           + (Din_p * E + NP * E + 2 * P * NP) * c_sz + E * 4
                           + B * L_p * E * o_sz),
    )

    out = pl.pallas_call(
        _embed_kernel,
        out_shape=jax.ShapeDtypeStruct((B, L_p, E), out_dtype),
        grid=(B, L_p // TL),
        in_specs=[
            # Streamed per-(b, l-tile) inputs (default depth-2 pipeline; do not deepen
            # unless xprof shows latency-limited exposed DMA).
            pl.BlockSpec((1, TL, Din_p), lambda b, l: (b, l, 0)),
            pl.BlockSpec((1, TL, P), lambda b, l: (b, l, 0)),
            pl.BlockSpec((1, TL, P), lambda b, l: (b, l, 0)),
            # Residents (constant index maps).
            pl.BlockSpec((Din_p, E), lambda b, l: (0, 0)),
            pl.BlockSpec((NP, E), lambda b, l: (0, 0)),
            pl.BlockSpec((P, NP), lambda b, l: (0, 0)),
            pl.BlockSpec((P, NP), lambda b, l: (0, 0)),
            pl.BlockSpec((1, E), lambda b, l: (0, 0)),
        ],
        out_specs=pl.BlockSpec((1, TL, E), lambda b, l: (b, l, 0)),
        compiler_params=pltpu.CompilerParams(
            dimension_semantics=("parallel", "parallel"),
            vmem_limit_bytes=vmem_limit,
        ),
        cost_estimate=cost,
    )(pixel_values, A, Bm, w_t, pe_flat, RH, RW, bias)

    return out if L_p == L else out[:, :L, :]


# ---------------------------------------------------------------------------
if __name__ == "__main__":
    # Small synthetic config (mirrors Siglip2VisionConfig fields)
    batch_size = 2
    num_channels = 3
    patch_size = 2
    embed_dim = 32           # hidden_size
    num_patches = 16         # -> position_embedding_size = 4
    max_num_patches = 16     # sequence length L of pixel_values
    pos_size = int(num_patches ** 0.5)
    patch_dim = num_channels * patch_size * patch_size       # 12

    key = jax.random.PRNGKey(0)
    k_pv, k_w, k_b, k_pe = jax.random.split(key, 4)

    pixel_values = jax.random.normal(k_pv, (batch_size, max_num_patches, patch_dim), jnp.float32)
    spatial_shapes = np.array([[2, 3], [4, 4]], dtype=np.int64)   # h*w <= max_num_patches

    lin_w = jax.random.normal(k_w, (embed_dim, patch_dim), jnp.float32) * 0.02    # (out, in)
    lin_b = jax.random.normal(k_b, (embed_dim,), jnp.float32) * 0.02
    pos_emb = jax.random.normal(k_pe, (num_patches, embed_dim), jnp.float32) * 0.02

    # Host-side (numpy) reference of the original module math, via the dense matrices
    # (also implicitly validates the in-kernel factored reconstruction).
    M_np = build_resize_matrices(spatial_shapes, pos_size, max_num_patches).astype(np.float64)
    ref = (np.asarray(pixel_values, np.float64) @ np.asarray(lin_w, np.float64).T
           + np.asarray(lin_b, np.float64)
           + np.einsum("blp,pe->ble", M_np, np.asarray(pos_emb, np.float64)))

    # 1) f32 compute / f32 out (tight tolerance) — exercises the L-tiling (grid=(2,2)).
    out_f32 = siglip2_vision_embeddings(
        pixel_values, lin_w, lin_b, pos_emb, spatial_shapes,
        tile_l=8, compute_dtype=jnp.float32, out_dtype=jnp.float32)
    out_f32 = jax.block_until_ready(out_f32)
    np.testing.assert_allclose(np.asarray(out_f32), ref, rtol=1e-5, atol=1e-5)

    # 2) Default production path (bf16 compute, bf16 out), tiled L.
    out_bf16 = siglip2_vision_embeddings(
        pixel_values, lin_w, lin_b, pos_emb, spatial_shapes, tile_l=8)
    out_bf16 = jax.block_until_ready(out_bf16)
    np.testing.assert_allclose(np.asarray(out_bf16.astype(jnp.float32)), ref,
                               rtol=2e-2, atol=2e-2)

    # 3) Default tile_l (single L tile at this toy size).
    out_def = siglip2_vision_embeddings(pixel_values, lin_w, lin_b, pos_emb, spatial_shapes)
    out_def = jax.block_until_ready(out_def)
    np.testing.assert_allclose(np.asarray(out_def.astype(jnp.float32)), ref,
                               rtol=2e-2, atol=2e-2)

    print("KERNEL_OK")
</pallas_src>

<mosaic_0001>
module attributes {stable_mosaic.version = 11 : i64} {
  func.func @_embed_kernel(%arg0: i32, %arg1: i32, %arg2: memref<1x8x128xf32, #tpu.memory_space<vmem>>, %arg3: memref<1x8x4xf32, #tpu.memory_space<vmem>>, %arg4: memref<1x8x4xf32, #tpu.memory_space<vmem>>, %arg5: memref<128x32xf32, #tpu.memory_space<vmem>>, %arg6: memref<16x32xf32, #tpu.memory_space<vmem>>, %arg7: memref<4x16xf32, #tpu.memory_space<vmem>>, %arg8: memref<4x16xf32, #tpu.memory_space<vmem>>, %arg9: memref<1x32xf32, #tpu.memory_space<vmem>>, %arg10: memref<1x8x32xf32, #tpu.memory_space<vmem>>) attributes {dimension_semantics = [#tpu.dimension_semantics<parallel>, #tpu.dimension_semantics<parallel>], iteration_bounds = array<i64: 2, 2>, scalar_prefetch = 0 : i64, scratch_operands = 0 : i64, tpu.core_type = #tpu.core_type<tc>, window_params = [{transform_indices = @transform_0, window_bounds = array<i64: 1, 8, 128>}, {transform_indices = @transform_1, window_bounds = array<i64: 1, 8, 4>}, {transform_indices = @transform_2, window_bounds = array<i64: 1, 8, 4>}, {pipeline_mode = #tpu.pipeline_mode<synchronous>, transform_indices = @transform_3, window_bounds = array<i64: 128, 32>}, {pipeline_mode = #tpu.pipeline_mode<synchronous>, transform_indices = @transform_4, window_bounds = array<i64: 16, 32>}, {pipeline_mode = #tpu.pipeline_mode<synchronous>, transform_indices = @transform_5, window_bounds = array<i64: 4, 16>}, {pipeline_mode = #tpu.pipeline_mode<synchronous>, transform_indices = @transform_6, window_bounds = array<i64: 4, 16>}, {pipeline_mode = #tpu.pipeline_mode<synchronous>, transform_indices = @transform_7, window_bounds = array<i64: 1, 32>}, {transform_indices = @transform_8, window_bounds = array<i64: 1, 8, 32>}]} {
    %c0 = arith.constant 0 : index
    %c0_0 = arith.constant 0 : index
    %c0_1 = arith.constant 0 : index
    %0 = vector.load %arg2[%c0, %c0_0, %c0_1] : memref<1x8x128xf32, #tpu.memory_space<vmem>>, vector<1x8x128xf32>
    %1 = vector.shape_cast %0 : vector<1x8x128xf32> to vector<8x128xf32>
    %c0_2 = arith.constant 0 : index
    %c0_3 = arith.constant 0 : index
    %2 = vector.load %arg5[%c0_2, %c0_3] : memref<128x32xf32, #tpu.memory_space<vmem>>, vector<128x32xf32>
    %cst = arith.constant dense<0.000000e+00> : vector<8x32xf32>
    %3 = tpu.matmul %1, %2, %cst {dimension_numbers = #tpu.dot_dimension_numbers<[1], [0], [0], [1], [0, 0, 1, 1], [], []>} : vector<8x128xf32>, vector<128x32xf32>, vector<8x32xf32> -> vector<8x32xf32>
    %c0_4 = arith.constant 0 : index
    %c0_5 = arith.constant 0 : index
    %c0_6 = arith.constant 0 : index
    %4 = vector.load %arg3[%c0_4, %c0_5, %c0_6] : memref<1x8x4xf32, #tpu.memory_space<vmem>>, vector<1x8x4xf32>
    %5 = vector.shape_cast %4 : vector<1x8x4xf32> to vector<8x4xf32>
    %c0_7 = arith.constant 0 : index
    %c0_8 = arith.constant 0 : index
    %6 = vector.load %arg7[%c0_7, %c0_8] : memref<4x16xf32, #tpu.memory_space<vmem>>, vector<4x16xf32>
    %cst_9 = arith.constant dense<0.000000e+00> : vector<8x16xf32>
    %7 = tpu.matmul %5, %6, %cst_9 {dimension_numbers = #tpu.dot_dimension_numbers<[1], [0], [0], [1], [0, 0, 1, 1], [], []>} : vector<8x4xf32>, vector<4x16xf32>, vector<8x16xf32> -> vector<8x16xf32>
    %c0_10 = arith.constant 0 : index
    %c0_11 = arith.constant 0 : index
    %c0_12 = arith.constant 0 : index
    %8 = vector.load %arg4[%c0_10, %c0_11, %c0_12] : memref<1x8x4xf32, #tpu.memory_space<vmem>>, vector<1x8x4xf32>
    %9 = vector.shape_cast %8 : vector<1x8x4xf32> to vector<8x4xf32>
    %c0_13 = arith.constant 0 : index
    %c0_14 = arith.constant 0 : index
    %10 = vector.load %arg8[%c0_13, %c0_14] : memref<4x16xf32, #tpu.memory_space<vmem>>, vector<4x16xf32>
    %cst_15 = arith.constant dense<0.000000e+00> : vector<8x16xf32>
    %11 = tpu.matmul %9, %10, %cst_15 {dimension_numbers = #tpu.dot_dimension_numbers<[1], [0], [0], [1], [0, 0, 1, 1], [], []>} : vector<8x4xf32>, vector<4x16xf32>, vector<8x16xf32> -> vector<8x16xf32>
    %12 = arith.mulf %7, %11 : vector<8x16xf32>
    %c0_16 = arith.constant 0 : index
    %c0_17 = arith.constant 0 : index
    %13 = vector.load %arg6[%c0_16, %c0_17] : memref<16x32xf32, #tpu.memory_space<vmem>>, vector<16x32xf32>
    %cst_18 = arith.constant dense<0.000000e+00> : vector<8x32xf32>
    %14 = tpu.matmul %12, %13, %cst_18 {dimension_numbers = #tpu.dot_dimension_numbers<[1], [0], [0], [1], [0, 0, 1, 1], [], []>} : vector<8x16xf32>, vector<16x32xf32>, vector<8x32xf32> -> vector<8x32xf32>
    %15 = arith.addf %3, %14 : vector<8x32xf32>
    %c0_19 = arith.constant 0 : index
    %c0_20 = arith.constant 0 : index
    %16 = vector.load %arg9[%c0_19, %c0_20] : memref<1x32xf32, #tpu.memory_space<vmem>>, vector<1x32xf32>
    %17 = vector.broadcast %16 : vector<1x32xf32> to vector<8x32xf32>
    %18 = arith.addf %15, %17 : vector<8x32xf32>
    %c0_21 = arith.constant 0 : index
    %c0_22 = arith.constant 0 : index
    %c0_23 = arith.constant 0 : index
    %19 = vector.load %arg10[%c0_21, %c0_22, %c0_23] : memref<1x8x32xf32, #tpu.memory_space<vmem>>, vector<1x8x32xf32>
    %20 = vector.shape_cast %19 : vector<1x8x32xf32> to vector<8x32xf32>
    %21 = vector.shape_cast %18 : vector<8x32xf32> to vector<1x8x32xf32>
    tpu.vector_store %arg10[%c0_21, %c0_22, %c0_23], %21 {strides = array<i32>} : memref<1x8x32xf32, #tpu.memory_space<vmem>>, vector<1x8x32xf32>,
    return
  }
  func.func @transform_0(%arg0: i32, %arg1: i32) -> (i32, i32, i32) {
    %c0_i32 = arith.constant 0 : i32
    %c0_i32_0 = arith.constant 0 : i32
    return %arg0, %arg1, %c0_i32 : i32, i32, i32
  }
  func.func @transform_1(%arg0: i32, %arg1: i32) -> (i32, i32, i32) {
    %c0_i32 = arith.constant 0 : i32
    %c0_i32_0 = arith.constant 0 : i32
    return %arg0, %arg1, %c0_i32 : i32, i32, i32
  }
  func.func @transform_2(%arg0: i32, %arg1: i32) -> (i32, i32, i32) {
    %c0_i32 = arith.constant 0 : i32
    %c0_i32_0 = arith.constant 0 : i32
    return %arg0, %arg1, %c0_i32 : i32, i32, i32
  }
  func.func @transform_3(%arg0: i32, %arg1: i32) -> (i32, i32) {
    %c0_i32 = arith.constant 0 : i32
    %c0_i32_0 = arith.constant 0 : i32
    %c0_i32_1 = arith.constant 0 : i32
    return %c0_i32, %c0_i32_0 : i32, i32
  }
  func.func @transform_4(%arg0: i32, %arg1: i32) -> (i32, i32) {
    %c0_i32 = arith.constant 0 : i32
    %c0_i32_0 = arith.constant 0 : i32
    %c0_i32_1 = arith.constant 0 : i32
    return %c0_i32, %c0_i32_0 : i32, i32
  }
  func.func @transform_5(%arg0: i32, %arg1: i32) -> (i32, i32) {
    %c0_i32 = arith.constant 0 : i32
    %c0_i32_0 = arith.constant 0 : i32
    %c0_i32_1 = arith.constant 0 : i32
    return %c0_i32, %c0_i32_0 : i32, i32
  }
  func.func @transform_6(%arg0: i32, %arg1: i32) -> (i32, i32) {
    %c0_i32 = arith.constant 0 : i32
    %c0_i32_0 = arith.constant 0 : i32
    %c0_i32_1 = arith.constant 0 : i32
    return %c0_i32, %c0_i32_0 : i32, i32
  }
  func.func @transform_7(%arg0: i32, %arg1: i32) -> (i32, i32) {
    %c0_i32 = arith.constant 0 : i32
    %c0_i32_0 = arith.constant 0 : i32
    %c0_i32_1 = arith.constant 0 : i32
    return %c0_i32, %c0_i32_0 : i32, i32
  }
  func.func @transform_8(%arg0: i32, %arg1: i32) -> (i32, i32, i32) {
    %c0_i32 = arith.constant 0 : i32
    %c0_i32_0 = arith.constant 0 : i32
    return %arg0, %arg1, %c0_i32 : i32, i32, i32
  }
}

</mosaic_0001>

<llo_original>
// kernel: tpu_custom_call.1
$region0: #{tpu_custom_call.1}
  #allocation0 [shape = 'u32[]', space=smem, size = 0x4, offset = 0x4, fixed_abs, tag = 'smem constant byte address 0x4 - core index']
  #allocation1 [shape = 'u32[144,128]{1,0:T(1,128)}', space=vmem, size = 0x12000, scoped, tag = 'internal scratch']
  %s0 = inlined_call_operand.vmem [shape: f32[2,16,128], index: 0, kind: input, shape index: {}]
  %s1 = inlined_call_operand.vmem [shape: f32[2,16,4], index: 1, kind: input, shape index: {}]
  %s2 = inlined_call_operand.vmem [shape: f32[2,16,4], index: 2, kind: input, shape index: {}]
  %s3 = inlined_call_operand.vmem [shape: f32[128,32], index: 3, kind: input, shape index: {}]
  %s4 = inlined_call_operand.vmem [shape: f32[16,32], index: 4, kind: input, shape index: {}]
  %s5 = inlined_call_operand.vmem [shape: f32[4,16], index: 5, kind: input, shape index: {}]
  %s6 = inlined_call_operand.vmem [shape: f32[4,16], index: 6, kind: input, shape index: {}]
  %s7 = inlined_call_operand.vmem [shape: f32[1,32], index: 7, kind: input, shape index: {}]
  %s8 = inlined_call_operand.hbm [shape: f32[2,16,32], index: 8, kind: output, shape index: {}]
  %s9 = sld [smem:[#allocation0]]
  $region65: #{tpu_custom_call.1} parent=0
    _
  %s11 = ssub.s32 1, %s9
  %s12 = scalar_select 0, %s11, %s9
  $region1: #{tpu_custom_call.1} parent=0
    #allocation2 [shape = 'u8[8192]{0}', space=vmem, size = 0x2000, scoped, tag = 'output window, operand 0']
    #allocation3 [shape = 's32[2]{0}', space=sflag, size = 0x8, scoped, tag = 'scoped memory for tpu_custom_call.1']
    %13 = vsyncpa [#allocation3], 0
    %s14 = scalar_lea.sflag [#allocation3], 1
    %15 = vsyncpa %s14, 0
    loop: start=0, step=1, limit=6
    $region2: #{tpu_custom_call.1} parent=1 // loop_pre_header
      _
    $region3: #{tpu_custom_call.1} parent=1 // loop_header
      %s17 = sphi 0, %s21
      %p18 = scmp.ge.s32.totalorder %s17, 6
      %s24 = sphi 0, %s36
      %s25 = sphi 0, %s32
      %s26 = sphi 0, %s24
      %s27 = sphi 0, %s25
      %s28 = sphi 0, %s26
      %s29 = sphi 0, %s27
      %s41 = sphi 0, %s43
      %s44 = sphi 0, %s41
      %s45 = sphi 0, %s44
      %s61 = sphi 0, %s45
      %s69 = sphi 0, %s71
      %s72 = sphi 0, %s69
      %s73 = sphi 0, %s72
      %s89 = sphi 0, %s73
      %s97 = sphi 0, %s99
      %s100 = sphi 0, %s97
      %s101 = sphi 0, %s100
      %s117 = sphi 0, %s101
      %s121 = sphi 0, %s121
      %s123 = sphi 0, %s121
      %s124 = sphi 0, %s123
      %s138 = sphi 0, %s124
      %s142 = sphi 0, %s142
      %s144 = sphi 0, %s142
      %s145 = sphi 0, %s144
      %s159 = sphi 0, %s145
      %s163 = sphi 0, %s163
      %s165 = sphi 0, %s163
      %s166 = sphi 0, %s165
      %s180 = sphi 0, %s166
      %s184 = sphi 0, %s184
      %s186 = sphi 0, %s184
      %s187 = sphi 0, %s186
      %s201 = sphi 0, %s187
      %s205 = sphi 0, %s205
      %s207 = sphi 0, %s205
      %s208 = sphi 0, %s207
      %s222 = sphi 0, %s208
      %s230 = sphi 0, %s232
      %s233 = sphi 0, %s230
      %s234 = sphi 0, %s233
      %s250 = sphi 0, %s234
    $region4: #{tpu_custom_call.1} parent=1 // loop_header_branch
      %20 = sbr.rel (%p18) target = $region8
    $region5: #{tpu_custom_call.1} parent=1 // loop_body
      %s22 = ssub.s32 %s17, 1
      %s23 = ssub.s32 %s17, 2
      %s30 = sadd.s32 1, %s25
      %p31 = scmp.ge.s32.totalorder %s30, 2
      %s32 = scalar_select %p31, 0, %s30
      %s33 = sadd.s32 1, %s24
      %s34 = scalar_select %p31, %s33, %s24
      %p35 = scmp.ge.s32.totalorder %s34, 2
      %s36 = scalar_select %p35, 0, %s34
      %s37 = ssub.s32 %s24, %s36
      %s38 = ssub.s32 %s25, %s32
      %s39 = sor.u32 %s37, %s38
      %p40 = scmp.eq.s32.totalorder %s39, 0
      %s42 = sadd.s32 %s41, 1
      %s43 = scalar_select %p40, %s41, %s42
      %p46 = pneg %p40
      %p47 = scmp.eq.s32.totalorder %s17, 3
      %p48 = por %p46, %p47
      %p49 = scmp.ne.s32.totalorder %s41, %s44
      %p50 = scmp.eq.s32.totalorder %s17, 0
      %p51 = por %p49, %p50
      %p52 = scmp.ne.s32.totalorder %s41, %s44
      %p53 = scmp.eq.s32.totalorder %s22, 3
      %p54 = por %p52, %p53
      %p55 = scmp.ne.s32.totalorder %s44, %s45
      %p56 = scmp.eq.s32.totalorder %s22, 0
      %p57 = por %p55, %p56
      %p58 = scmp.ne.s32.totalorder %s44, %s45
      %p59 = scmp.eq.s32.totalorder %s23, 3
      %p60 = por %p58, %p59
      %p62 = scmp.ne.s32.totalorder %s45, %s61
      %p63 = scmp.eq.s32.totalorder %s23, 0
      %p64 = por %p62, %p63
      %s65 = ssub.s32 %s24, %s36
      %s66 = ssub.s32 %s25, %s32
      %s67 = sor.u32 %s65, %s66
      %p68 = scmp.eq.s32.totalorder %s67, 0
      %s70 = sadd.s32 %s69, 1
      %s71 = scalar_select %p68, %s69, %s70
      %p74 = pneg %p68
      %p75 = scmp.eq.s32.totalorder %s17, 3
      %p76 = por %p74, %p75
      %p77 = scmp.ne.s32.totalorder %s69, %s72
      %p78 = scmp.eq.s32.totalorder %s17, 0
      %p79 = por %p77, %p78
      %p80 = scmp.ne.s32.totalorder %s69, %s72
      %p81 = scmp.eq.s32.totalorder %s22, 3
      %p82 = por %p80, %p81
      %p83 = scmp.ne.s32.totalorder %s72, %s73
      %p84 = scmp.eq.s32.totalorder %s22, 0
      %p85 = por %p83, %p84
      %p86 = scmp.ne.s32.totalorder %s72, %s73
      %p87 = scmp.eq.s32.totalorder %s23, 3
      %p88 = por %p86, %p87
      %p90 = scmp.ne.s32.totalorder %s73, %s89
      %p91 = scmp.eq.s32.totalorder %s23, 0
      %p92 = por %p90, %p91
      %s93 = ssub.s32 %s24, %s36
      %s94 = ssub.s32 %s25, %s32
      %s95 = sor.u32 %s93, %s94
      %p96 = scmp.eq.s32.totalorder %s95, 0
      %s98 = sadd.s32 %s97, 1
      %s99 = scalar_select %p96, %s97, %s98
      %p102 = pneg %p96
      %p103 = scmp.eq.s32.totalorder %s17, 3
      %p104 = por %p102, %p103
      %p105 = scmp.ne.s32.totalorder %s97, %s100
      %p106 = scmp.eq.s32.totalorder %s17, 0
      %p107 = por %p105, %p106
      %p108 = scmp.ne.s32.totalorder %s97, %s100
      %p109 = scmp.eq.s32.totalorder %s22, 3
      %p110 = por %p108, %p109
      %p111 = scmp.ne.s32.totalorder %s100, %s101
      %p112 = scmp.eq.s32.totalorder %s22, 0
      %p113 = por %p111, %p112
      %p114 = scmp.ne.s32.totalorder %s100, %s101
      %p115 = scmp.eq.s32.totalorder %s23, 3
      %p116 = por %p114, %p115
      %p118 = scmp.ne.s32.totalorder %s101, %s117
      %p119 = scmp.eq.s32.totalorder %s23, 0
      %p120 = por %p118, %p119
      %s122 = sadd.s32 %s121, 1
      %p125 = scmp.eq.s32.totalorder %s17, 3
      %p126 = scmp.ne.s32.totalorder %s121, %s123
      %p127 = scmp.eq.s32.totalorder %s17, 0
      %p128 = por %p126, %p127
      %p129 = scmp.ne.s32.totalorder %s121, %s123
      %p130 = scmp.eq.s32.totalorder %s22, 3
      %p131 = por %p129, %p130
      %p132 = scmp.ne.s32.totalorder %s123, %s124
      %p133 = scmp.eq.s32.totalorder %s22, 0
      %p134 = por %p132, %p133
      %p135 = scmp.ne.s32.totalorder %s123, %s124
      %p136 = scmp.eq.s32.totalorder %s23, 3
      %p137 = por %p135, %p136
      %p139 = scmp.ne.s32.totalorder %s124, %s138
      %p140 = scmp.eq.s32.totalorder %s23, 0
      %p141 = por %p139, %p140
      %s143 = sadd.s32 %s142, 1
      %p146 = scmp.eq.s32.totalorder %s17, 3
      %p147 = scmp.ne.s32.totalorder %s142, %s144
      %p148 = scmp.eq.s32.totalorder %s17, 0
      %p149 = por %p147, %p148
      %p150 = scmp.ne.s32.totalorder %s142, %s144
      %p151 = scmp.eq.s32.totalorder %s22, 3
      %p152 = por %p150, %p151
      %p153 = scmp.ne.s32.totalorder %s144, %s145
      %p154 = scmp.eq.s32.totalorder %s22, 0
      %p155 = por %p153, %p154
      %p156 = scmp.ne.s32.totalorder %s144, %s145
      %p157 = scmp.eq.s32.totalorder %s23, 3
      %p158 = por %p156, %p157
      %p160 = scmp.ne.s32.totalorder %s145, %s159
      %p161 = scmp.eq.s32.totalorder %s23, 0
      %p162 = por %p160, %p161
      %s164 = sadd.s32 %s163, 1
      %p167 = scmp.eq.s32.totalorder %s17, 3
      %p168 = scmp.ne.s32.totalorder %s163, %s165
      %p169 = scmp.eq.s32.totalorder %s17, 0
      %p170 = por %p168, %p169
      %p171 = scmp.ne.s32.totalorder %s163, %s165
      %p172 = scmp.eq.s32.totalorder %s22, 3
      %p173 = por %p171, %p172
      %p174 = scmp.ne.s32.totalorder %s165, %s166
      %p175 = scmp.eq.s32.totalorder %s22, 0
      %p176 = por %p174, %p175
      %p177 = scmp.ne.s32.totalorder %s165, %s166
      %p178 = scmp.eq.s32.totalorder %s23, 3
      %p179 = por %p177, %p178
      %p181 = scmp.ne.s32.totalorder %s166, %s180
      %p182 = scmp.eq.s32.totalorder %s23, 0
      %p183 = por %p181, %p182
      %s185 = sadd.s32 %s184, 1
      %p188 = scmp.eq.s32.totalorder %s17, 3
      %p189 = scmp.ne.s32.totalorder %s184, %s186
      %p190 = scmp.eq.s32.totalorder %s17, 0
      %p191 = por %p189, %p190
      %p192 = scmp.ne.s32.totalorder %s184, %s186
      %p193 = scmp.eq.s32.totalorder %s22, 3
      %p194 = por %p192, %p193
      %p195 = scmp.ne.s32.totalorder %s186, %s187
      %p196 = scmp.eq.s32.totalorder %s22, 0
      %p197 = por %p195, %p196
      %p198 = scmp.ne.s32.totalorder %s186, %s187
      %p199 = scmp.eq.s32.totalorder %s23, 3
      %p200 = por %p198, %p199
      %p202 = scmp.ne.s32.totalorder %s187, %s201
      %p203 = scmp.eq.s32.totalorder %s23, 0
      %p204 = por %p202, %p203
      %s206 = sadd.s32 %s205, 1
      %p209 = scmp.eq.s32.totalorder %s17, 3
      %p210 = scmp.ne.s32.totalorder %s205, %s207
      %p211 = scmp.eq.s32.totalorder %s17, 0
      %p212 = por %p210, %p211
      %p213 = scmp.ne.s32.totalorder %s205, %s207
      %p214 = scmp.eq.s32.totalorder %s22, 3
      %p215 = por %p213, %p214
      %p216 = scmp.ne.s32.totalorder %s207, %s208
      %p217 = scmp.eq.s32.totalorder %s22, 0
      %p218 = por %p216, %p217
      %p219 = scmp.ne.s32.totalorder %s207, %s208
      %p220 = scmp.eq.s32.totalorder %s23, 3
      %p221 = por %p219, %p220
      %p223 = scmp.ne.s32.totalorder %s208, %s222
      %p224 = scmp.eq.s32.totalorder %s23, 0
      %p225 = por %p223, %p224
      %s226 = ssub.s32 %s24, %s36
      %s227 = ssub.s32 %s25, %s32
      %s228 = sor.u32 %s226, %s227
      %p229 = scmp.eq.s32.totalorder %s228, 0
      %s231 = sadd.s32 %s230, 1
      %s232 = scalar_select %p229, %s230, %s231
      %p235 = pneg %p229
      %p236 = scmp.eq.s32.totalorder %s17, 3
      %p237 = por %p235, %p236
      %p238 = scmp.ne.s32.totalorder %s230, %s233
      %p239 = scmp.eq.s32.totalorder %s17, 0
      %p240 = por %p238, %p239
      %p241 = scmp.ne.s32.totalorder %s230, %s233
      %p242 = scmp.eq.s32.totalorder %s22, 3
      %p243 = por %p241, %p242
      %p244 = scmp.ne.s32.totalorder %s233, %s234
      %p245 = scmp.eq.s32.totalorder %s22, 0
      %p246 = por %p244, %p245
      %p247 = scmp.ne.s32.totalorder %s233, %s234
      %p248 = scmp.eq.s32.totalorder %s23, 3
      %p249 = por %p247, %p248
      %p251 = scmp.ne.s32.totalorder %s234, %s250
      %p252 = scmp.eq.s32.totalorder %s23, 0
      %p253 = por %p251, %p252
      %p254 = scmp.le.s32.totalorder 1, %s17
      %p255 = scmp.lt.s32.totalorder %s17, 5
      %p256 = pnand %p254, %p255
      %p257 = pneg %p256
      // Predicated region
      $region9: #{tpu_custom_call.1} parent=5 // pred_check
        _
      $region10: #{tpu_custom_call.1} parent=5 // pred_check_branch
        %259 = sbr.rel (%p256) target = $region12
      $region11: #{tpu_custom_call.1} parent=5 // pred_region
        %s260 = ssub.s32 %s17, 1
        // Predicated region
        $region13: #{tpu_custom_call.1} parent=11 // pred_check
          %p261 = pneg %p134
        $region14: #{tpu_custom_call.1} parent=11 // pred_check_branch
          %263 = sbr.rel (%p261) target = $region16
        $region15: #{tpu_custom_call.1} parent=11 // pred_region
          _
        $region16: #{tpu_custom_call.1} parent=11 // pred_fallthru
          _
        // Predicated region
        $region17: #{tpu_custom_call.1} parent=11 // pred_check
          %p264 = pneg %p155
        $region18: #{tpu_custom_call.1} parent=11 // pred_check_branch
          %266 = sbr.rel (%p264) target = $region20
        $region19: #{tpu_custom_call.1} parent=11 // pred_region
          _
        $region20: #{tpu_custom_call.1} parent=11 // pred_fallthru
          _
        // Predicated region
        $region21: #{tpu_custom_call.1} parent=11 // pred_check
          %p267 = pneg %p176
        $region22: #{tpu_custom_call.1} parent=11 // pred_check_branch
          %269 = sbr.rel (%p267) target = $region24
        $region23: #{tpu_custom_call.1} parent=11 // pred_region
          _
        $region24: #{tpu_custom_call.1} parent=11 // pred_fallthru
          _
        // Predicated region
        $region25: #{tpu_custom_call.1} parent=11 // pred_check
          %p270 = pneg %p197
        $region26: #{tpu_custom_call.1} parent=11 // pred_check_branch
          %272 = sbr.rel (%p270) target = $region28
        $region27: #{tpu_custom_call.1} parent=11 // pred_region
          _
        $region28: #{tpu_custom_call.1} parent=11 // pred_fallthru
          _
        // Predicated region
        $region29: #{tpu_custom_call.1} parent=11 // pred_check
          %p273 = pneg %p218
        $region30: #{tpu_custom_call.1} parent=11 // pred_check_branch
          %275 = sbr.rel (%p273) target = $region32
        $region31: #{tpu_custom_call.1} parent=11 // pred_region
          _
        $region32: #{tpu_custom_call.1} parent=11 // pred_fallthru
          _
      $region12: #{tpu_custom_call.1} parent=5 // pred_fallthru
        _
      %p276 = scmp.lt.s32.totalorder %s17, 4
      // Predicated region
      $region33: #{tpu_custom_call.1} parent=5 // pred_check
        %p277 = pneg %p276
      $region34: #{tpu_custom_call.1} parent=5 // pred_check_branch
        %279 = sbr.rel (%p277) target = $region36
      $region35: #{tpu_custom_call.1} parent=5 // pred_region
        // Predicated region
        $region37: #{tpu_custom_call.1} parent=35 // pred_check
          %p280 = pneg %p51
        $region38: #{tpu_custom_call.1} parent=35 // pred_check_branch
          %282 = sbr.rel (%p280) target = $region40
        $region39: #{tpu_custom_call.1} parent=35 // pred_region
          %p283 = scmp.lt.s32.totalorder %s24, 1
          %s284 = scalar_select %p283, %s24, 1
          %p285 = scmp.lt.s32.totalorder %s25, 1
          %s286 = scalar_select %p285, %s25, 1
          %s287 = smul.addr %s284, 2
          %s288 = sadd.s32 %s286, %s287
          %s289 = smul.addr %s288, 8
          %s290 = scalar_lea.vmem %s0, %s289
        $region40: #{tpu_custom_call.1} parent=35 // pred_fallthru
          _
        // Predicated region
        $region41: #{tpu_custom_call.1} parent=35 // pred_check
          %p291 = pneg %p79
        $region42: #{tpu_custom_call.1} parent=35 // pred_check_branch
          %293 = sbr.rel (%p291) target = $region44
        $region43: #{tpu_custom_call.1} parent=35 // pred_region
          %p294 = scmp.lt.s32.totalorder %s24, 1
          %s295 = scalar_select %p294, %s24, 1
          %p296 = scmp.lt.s32.totalorder %s25, 1
          %s297 = scalar_select %p296, %s25, 1
          %s298 = smul.addr %s295, 2
          %s299 = sadd.s32 %s297, %s298
          %s300 = smul.addr %s299, 8
          %s301 = scalar_lea.vmem %s1, %s300
        $region44: #{tpu_custom_call.1} parent=35 // pred_fallthru
          _
        // Predicated region
        $region45: #{tpu_custom_call.1} parent=35 // pred_check
          %p302 = pneg %p107
        $region46: #{tpu_custom_call.1} parent=35 // pred_check_branch
          %304 = sbr.rel (%p302) target = $region48
        $region47: #{tpu_custom_call.1} parent=35 // pred_region
          %p305 = scmp.lt.s32.totalorder %s24, 1
          %s306 = scalar_select %p305, %s24, 1
          %p307 = scmp.lt.s32.totalorder %s25, 1
          %s308 = scalar_select %p307, %s25, 1
          %s309 = smul.addr %s306, 2
          %s310 = sadd.s32 %s308, %s309
          %s311 = smul.addr %s310, 8
          %s312 = scalar_lea.vmem %s2, %s311
        $region48: #{tpu_custom_call.1} parent=35 // pred_fallthru
          _
      $region36: #{tpu_custom_call.1} parent=5 // pred_fallthru
        _
      %p313 = scmp.le.s32.totalorder 1, %s17
      %p314 = scmp.lt.s32.totalorder %s17, 5
      %p315 = pnand %p313, %p314
      %p316 = pneg %p315
      // Predicated region
      $region49: #{tpu_custom_call.1} parent=5 // pred_check
        _
      $region50: #{tpu_custom_call.1} parent=5 // pred_check_branch
        %318 = sbr.rel (%p315) target = $region52
      $region51: #{tpu_custom_call.1} parent=5 // pred_region
        %s319 = ssub.s32 %s17, 1
        %p320 = scmp.lt.s32.totalorder %s26, 1
        %s321 = scalar_select %p320, %s26, 1
        %p322 = scmp.lt.s32.totalorder %s27, 1
        %s323 = scalar_select %p322, %s27, 1
        %s324 = smul.addr %s321, 2
        %s325 = sadd.s32 %s323, %s324
        %s326 = smul.addr %s325, 8
        %s327 = scalar_lea.vmem %s0, %s326
        %p328 = pneg %p57
        %p329 = pneg %p54
        %p330 = scmp.lt.s32.totalorder %s26, 1
        %s331 = scalar_select %p330, %s26, 1
        %p332 = scmp.lt.s32.totalorder %s27, 1
        %s333 = scalar_select %p332, %s27, 1
        %s334 = smul.addr %s331, 2
        %s335 = sadd.s32 %s333, %s334
        %s336 = smul.addr %s335, 8
        %s337 = scalar_lea.vmem %s1, %s336
        %p338 = pneg %p85
        %p339 = pneg %p82
        %p340 = scmp.lt.s32.totalorder %s26, 1
        %s341 = scalar_select %p340, %s26, 1
        %p342 = scmp.lt.s32.totalorder %s27, 1
        %s343 = scalar_select %p342, %s27, 1
        %s344 = smul.addr %s341, 2
        %s345 = sadd.s32 %s343, %s344
        %s346 = smul.addr %s345, 8
        %s347 = scalar_lea.vmem %s2, %s346
        %p348 = pneg %p113
        %p349 = pneg %p110
        %p350 = pneg %p134
        %p351 = pneg %p131
        %p352 = pneg %p155
        %p353 = pneg %p152
        %p354 = pneg %p176
        %p355 = pneg %p173
        %p356 = pneg %p197
        %p357 = pneg %p194
        %p358 = pneg %p218
        %p359 = pneg %p215
        %p360 = pneg %p246
        %p361 = pneg %p243
        %s362 = sand.u32 %s233, 1
        %s363 = scalar_lea.sflag [#allocation3], %s362
        %s364 = sand.u32 %s233, 1
        %s365 = smul.addr %s364, 8
        %s366 = scalar_lea.vmem [#allocation2], %s365
        %p367 = scmp.lt.s32.totalorder %s26, 1
        %s368 = scalar_select %p367, %s26, 1
        %p369 = scmp.lt.s32.totalorder %s27, 1
        %s370 = scalar_select %p369, %s27, 1
        %s371 = smul.addr %s368, 2
        %s372 = sadd.s32 %s370, %s371
        %s373 = smul.addr %s372, 8
        %s374 = scalar_lea.vmem %s0, %s373
        %p375 = scmp.lt.s32.totalorder %s26, 1
        %s376 = scalar_select %p375, %s26, 1
        %p377 = scmp.lt.s32.totalorder %s27, 1
        %s378 = scalar_select %p377, %s27, 1
        %s379 = smul.addr %s376, 2
        %s380 = sadd.s32 %s378, %s379
        %s381 = smul.addr %s380, 8
        %s382 = scalar_lea.vmem %s1, %s381
        %p383 = scmp.lt.s32.totalorder %s26, 1
        %s384 = scalar_select %p383, %s26, 1
        %p385 = scmp.lt.s32.totalorder %s27, 1
        %s386 = scalar_select %p385, %s27, 1
        %s387 = smul.addr %s384, 2
        %s388 = sadd.s32 %s386, %s387
        %s389 = smul.addr %s388, 8
        %s390 = scalar_lea.vmem %s2, %s389
        %v391 = vld [vmem:[%s374] sm:$0xff]
        %v392 = vld [vmem:[%s3] sm:$0xff]
        %v393 = vld [vmem:[%s3 + $0x8] sm:$0xff]
        %v394 = vld [vmem:[%s3 + $0x10] sm:$0xff]
        %v395 = vld [vmem:[%s3 + $0x18] sm:$0xff]
        %v396 = vld [vmem:[%s3 + $0x20] sm:$0xff]
        %v397 = vld [vmem:[%s3 + $0x28] sm:$0xff]
        %v398 = vld [vmem:[%s3 + $0x30] sm:$0xff]
        %v399 = vld [vmem:[%s3 + $0x38] sm:$0xff]
        %v400 = vld [vmem:[%s3 + $0x40] sm:$0xff]
        %v401 = vld [vmem:[%s3 + $0x48] sm:$0xff]
        %v402 = vld [vmem:[%s3 + $0x50] sm:$0xff]
        %v403 = vld [vmem:[%s3 + $0x58] sm:$0xff]
        %v404 = vld [vmem:[%s3 + $0x60] sm:$0xff]
        %v405 = vld [vmem:[%s3 + $0x68] sm:$0xff]
        %v406 = vld [vmem:[%s3 + $0x70] sm:$0xff]
        %v407 = vld [vmem:[%s3 + $0x78] sm:$0xff]
        %v408 = vld [vmem:[%s382] sm:$0xff]
        %v409 = vld [vmem:[%s5] sm:$0xf]
        %vm410 = vcmask 31744
        %v412 = vsel %vm410, %v408, 0
        %vm414 = vcmask 1043456
        %v416 = vsel %vm414, %v409, 0
        %418 = vmatprep.subr.mxu0 0.0
        %419 = vmatpush1.msra.mxu0 %v416
        %420 = vmatprep.subr.mxu0 0.0
        %421 = vmatpush1.msra.mxu0 0.0
        %422 = vmatprep.subr.mxu0 0.0
        %423 = vmatpush1.msra.mxu0 0.0
        %424 = vmatprep.subr.mxu0 0.0
        %425 = vmatpush1.msra.mxu0 0.0
        %426 = vmatprep.subr.mxu0 0.0
        %427 = vmatpush1.msra.mxu0 0.0
        %428 = vmatprep.subr.mxu0 0.0
        %429 = vmatpush1.msra.mxu0 0.0
        %430 = vmatprep.subr.mxu0 0.0
        %431 = vmatpush1.msra.mxu0 0.0
        %432 = vmatprep.subr.mxu0 0.0
        %433 = vmatpush1.msra.mxu0 0.0
        %434 = vmatprep.subr.mxu0 0.0
        %435 = vmatpush1.msra.mxu0 0.0
        %436 = vmatprep.subr.mxu0 0.0
        %437 = vmatpush1.msra.mxu0 0.0
        %438 = vmatprep.subr.mxu0 0.0
        %439 = vmatpush1.msra.mxu0 0.0
        %440 = vmatprep.subr.mxu0 0.0
        %441 = vmatpush1.msra.mxu0 0.0
        %442 = vmatprep.subr.mxu0 0.0
        %443 = vmatpush1.msra.mxu0 0.0
        %444 = vmatprep.subr.mxu0 0.0
        %445 = vmatpush1.msra.mxu0 0.0
        %446 = vmatprep.subr.mxu0 0.0
        %447 = vmatpush1.msra.mxu0 0.0
        %448 = vmatprep.subr.mxu0 0.0
        %449 = vmatpush1.msra.mxu0 0.0
        %450 = vmatprep.subr.mxu0 0.0
        %451 = vmatpush1.msra.mxu0 0.0
        %452 = vmatprep.subr.mxu0 0.0
        %453 = vmatpush1.msra.mxu0 0.0
        %454 = vmatprep.subr.mxu0 0.0
        %455 = vmatpush1.msra.mxu0 0.0
        %456 = vmatprep.subr.mxu0 0.0
        %457 = vmatpush1.msra.mxu0 0.0
        %458 = vmatprep.subr.mxu0 0.0
        %459 = vmatpush1.msra.mxu0 0.0
        %460 = vmatprep.subr.mxu0 0.0
        %461 = vmatpush1.msra.mxu0 0.0
        %462 = vmatprep.subr.mxu0 0.0
        %463 = vmatpush1.msra.mxu0 0.0
        %464 = vmatprep.subr.mxu0 0.0
        %465 = vmatpush1.msra.mxu0 0.0
        %466 = vmatprep.subr.mxu0 0.0
        %467 = vmatpush1.msra.mxu0 0.0
        %468 = vmatprep.subr.mxu0 0.0
        %469 = vmatpush1.msra.mxu0 0.0
        %470 = vmatprep.subr.mxu0 0.0
        %471 = vmatpush1.msra.mxu0 0.0
        %472 = vmatprep.subr.mxu0 0.0
        %473 = vmatpush1.msra.mxu0 0.0
        %474 = vmatprep.subr.mxu0 0.0
        %475 = vmatpush1.msra.mxu0 0.0
        %476 = vmatprep.subr.mxu0 0.0
        %477 = vmatpush1.msra.mxu0 0.0
        %478 = vmatprep.subr.mxu0 0.0
        %479 = vmatpush1.msra.mxu0 0.0
        %480 = vmatprep.subr.mxu0 0.0
        %481 = vmatpush1.msra.mxu0 0.0
        %482 = vmatprep.mubr.f32.mxu0 0.0
        %483 = vmatmul.mubr.f32.gmra.mrb[0].mxu0 %v412
        %v484 = vpop.f32.mrb[0].mxu0
        %v485 = vadd.f32 0.0, %v484
        %v486 = vpop.f32.mrb[0].mxu0
        %487 = vdwg.mxu0
        %v488 = vld [vmem:[%s390] sm:$0xff]
        %v489 = vld [vmem:[%s6] sm:$0xf]
        %v491 = vsel %vm410, %v488, 0
        %v494 = vsel %vm414, %v489, 0
        %496 = vmatprep.subr.mxu0 0.0
        %497 = vmatpush1.msra.mxu0 %v494
        %498 = vmatprep.subr.mxu0 0.0
        %499 = vmatpush1.msra.mxu0 0.0
        %500 = vmatprep.subr.mxu0 0.0
        %501 = vmatpush1.msra.mxu0 0.0
        %502 = vmatprep.subr.mxu0 0.0
        %503 = vmatpush1.msra.mxu0 0.0
        %504 = vmatprep.subr.mxu0 0.0
        %505 = vmatpush1.msra.mxu0 0.0
        %506 = vmatprep.subr.mxu0 0.0
        %507 = vmatpush1.msra.mxu0 0.0
        %508 = vmatprep.subr.mxu0 0.0
        %509 = vmatpush1.msra.mxu0 0.0
        %510 = vmatprep.subr.mxu0 0.0
        %511 = vmatpush1.msra.mxu0 0.0
        %512 = vmatprep.subr.mxu0 0.0
        %513 = vmatpush1.msra.mxu0 0.0
        %514 = vmatprep.subr.mxu0 0.0
        %515 = vmatpush1.msra.mxu0 0.0
        %516 = vmatprep.subr.mxu0 0.0
        %517 = vmatpush1.msra.mxu0 0.0
        %518 = vmatprep.subr.mxu0 0.0
        %519 = vmatpush1.msra.mxu0 0.0
        %520 = vmatprep.subr.mxu0 0.0
        %521 = vmatpush1.msra.mxu0 0.0
        %522 = vmatprep.subr.mxu0 0.0
        %523 = vmatpush1.msra.mxu0 0.0
        %524 = vmatprep.subr.mxu0 0.0
        %525 = vmatpush1.msra.mxu0 0.0
        %526 = vmatprep.subr.mxu0 0.0
        %527 = vmatpush1.msra.mxu0 0.0
        %528 = vmatprep.subr.mxu0 0.0
        %529 = vmatpush1.msra.mxu0 0.0
        %530 = vmatprep.subr.mxu0 0.0
        %531 = vmatpush1.msra.mxu0 0.0
        %532 = vmatprep.subr.mxu0 0.0
        %533 = vmatpush1.msra.mxu0 0.0
        %534 = vmatprep.subr.mxu0 0.0
        %535 = vmatpush1.msra.mxu0 0.0
        %536 = vmatprep.subr.mxu0 0.0
        %537 = vmatpush1.msra.mxu0 0.0
        %538 = vmatprep.subr.mxu0 0.0
        %539 = vmatpush1.msra.mxu0 0.0
        %540 = vmatprep.subr.mxu0 0.0
        %541 = vmatpush1.msra.mxu0 0.0
        %542 = vmatprep.subr.mxu0 0.0
        %543 = vmatpush1.msra.mxu0 0.0
        %544 = vmatprep.subr.mxu0 0.0
        %545 = vmatpush1.msra.mxu0 0.0
        %546 = vmatprep.subr.mxu0 0.0
        %547 = vmatpush1.msra.mxu0 0.0
        %548 = vmatprep.subr.mxu0 0.0
        %549 = vmatpush1.msra.mxu0 0.0
        %550 = vmatprep.subr.mxu0 0.0
        %551 = vmatpush1.msra.mxu0 0.0
        %552 = vmatprep.subr.mxu0 0.0
        %553 = vmatpush1.msra.mxu0 0.0
        %554 = vmatprep.subr.mxu0 0.0
        %555 = vmatpush1.msra.mxu0 0.0
        %556 = vmatprep.subr.mxu0 0.0
        %557 = vmatpush1.msra.mxu0 0.0
        %558 = vmatprep.subr.mxu0 0.0
        %559 = vmatpush1.msra.mxu0 0.0
        %560 = vmatprep.mubr.f32.mxu0 0.0
        %561 = vmatmul.mubr.f32.gmra.mrb[0].mxu0 %v491
        %v562 = vpop.f32.mrb[0].mxu0
        %v563 = vadd.f32 0.0, %v562
        %v564 = vpop.f32.mrb[0].mxu0
        %565 = vdwg.mxu0
        %v566 = vmul.f32 %v485, %v563
        %v567 = vld [vmem:[%s4] sm:$0xff]
        %v568 = vld [vmem:[%s4 + $0x8] sm:$0xff]
        %vm569 = vcmask 130048
        %v571 = vsel %vm569, %v566, 0
        %573 = vmatprep.subr.mxu0 0.0
        %574 = vmatpush1.msra.mxu0 %v567
        %575 = vmatprep.subr.mxu0 0.0
        %576 = vmatpush1.msra.mxu0 %v568
        %577 = vmatprep.subr.mxu0 0.0
        %578 = vmatpush1.msra.mxu0 0.0
        %579 = vmatprep.subr.mxu0 0.0
        %580 = vmatpush1.msra.mxu0 0.0
        %581 = vmatprep.subr.mxu0 0.0
        %582 = vmatpush1.msra.mxu0 0.0
        %583 = vmatprep.subr.mxu0 0.0
        %584 = vmatpush1.msra.mxu0 0.0
        %585 = vmatprep.subr.mxu0 0.0
        %586 = vmatpush1.msra.mxu0 0.0
        %587 = vmatprep.subr.mxu0 0.0
        %588 = vmatpush1.msra.mxu0 0.0
        %589 = vmatprep.subr.mxu0 0.0
        %590 = vmatpush1.msra.mxu0 0.0
        %591 = vmatprep.subr.mxu0 0.0
        %592 = vmatpush1.msra.mxu0 0.0
        %593 = vmatprep.subr.mxu0 0.0
        %594 = vmatpush1.msra.mxu0 0.0
        %595 = vmatprep.subr.mxu0 0.0
        %596 = vmatpush1.msra.mxu0 0.0
        %597 = vmatprep.subr.mxu0 0.0
        %598 = vmatpush1.msra.mxu0 0.0
        %599 = vmatprep.subr.mxu0 0.0
        %600 = vmatpush1.msra.mxu0 0.0
        %601 = vmatprep.subr.mxu0 0.0
        %602 = vmatpush1.msra.mxu0 0.0
        %603 = vmatprep.subr.mxu0 0.0
        %604 = vmatpush1.msra.mxu0 0.0
        %605 = vmatprep.subr.mxu0 0.0
        %606 = vmatpush1.msra.mxu0 0.0
        %607 = vmatprep.subr.mxu0 0.0
        %608 = vmatpush1.msra.mxu0 0.0
        %609 = vmatprep.subr.mxu0 0.0
        %610 = vmatpush1.msra.mxu0 0.0
        %611 = vmatprep.subr.mxu0 0.0
        %612 = vmatpush1.msra.mxu0 0.0
        %613 = vmatprep.subr.mxu0 0.0
        %614 = vmatpush1.msra.mxu0 0.0
        %615 = vmatprep.subr.mxu0 0.0
        %616 = vmatpush1.msra.mxu0 0.0
        %617 = vmatprep.subr.mxu0 0.0
        %618 = vmatpush1.msra.mxu0 0.0
        %619 = vmatprep.subr.mxu0 0.0
        %620 = vmatpush1.msra.mxu0 0.0
        %621 = vmatprep.subr.mxu0 0.0
        %622 = vmatpush1.msra.mxu0 0.0
        %623 = vmatprep.subr.mxu0 0.0
        %624 = vmatpush1.msra.mxu0 0.0
        %625 = vmatprep.subr.mxu0 0.0
        %626 = vmatpush1.msra.mxu0 0.0
        %627 = vmatprep.subr.mxu0 0.0
        %628 = vmatpush1.msra.mxu0 0.0
        %629 = vmatprep.subr.mxu0 0.0
        %630 = vmatpush1.msra.mxu0 0.0
        %631 = vmatprep.subr.mxu0 0.0
        %632 = vmatpush1.msra.mxu0 0.0
        %633 = vmatprep.subr.mxu0 0.0
        %634 = vmatpush1.msra.mxu0 0.0
        %635 = vmatprep.subr.mxu0 0.0
        %636 = vmatpush1.msra.mxu0 0.0
        %637 = vmatprep.mubr.f32.mxu0 0.0
        %638 = vmatmul.mubr.f32.gmra.mrb[0].mxu0 %v571
        %v639 = vpop.f32.mrb[0].mxu0
        %v640 = vadd.f32 0.0, %v639
        %v641 = vpop.f32.mrb[0].mxu0
        %642 = vdwg.mxu0
        %643 = vmatprep.subr.mxu0 0.0
        %644 = vmatpush1.msra.mxu0 %v392
        %645 = vmatprep.subr.mxu0 0.0
        %646 = vmatpush1.msra.mxu0 %v393
        %647 = vmatprep.subr.mxu0 0.0
        %648 = vmatpush1.msra.mxu0 %v394
        %649 = vmatprep.subr.mxu0 0.0
        %650 = vmatpush1.msra.mxu0 %v395
        %651 = vmatprep.subr.mxu0 0.0
        %652 = vmatpush1.msra.mxu0 %v396
        %653 = vmatprep.subr.mxu0 0.0
        %654 = vmatpush1.msra.mxu0 %v397
        %655 = vmatprep.subr.mxu0 0.0
        %656 = vmatpush1.msra.mxu0 %v398
        %657 = vmatprep.subr.mxu0 0.0
        %658 = vmatpush1.msra.mxu0 %v399
        %659 = vmatprep.subr.mxu0 0.0
        %660 = vmatpush1.msra.mxu0 %v400
        %661 = vmatprep.subr.mxu0 0.0
        %662 = vmatpush1.msra.mxu0 %v401
        %663 = vmatprep.subr.mxu0 0.0
        %664 = vmatpush1.msra.mxu0 %v402
        %665 = vmatprep.subr.mxu0 0.0
        %666 = vmatpush1.msra.mxu0 %v403
        %667 = vmatprep.subr.mxu0 0.0
        %668 = vmatpush1.msra.mxu0 %v404
        %669 = vmatprep.subr.mxu0 0.0
        %670 = vmatpush1.msra.mxu0 %v405
        %671 = vmatprep.subr.mxu0 0.0
        %672 = vmatpush1.msra.mxu0 %v406
        %673 = vmatprep.subr.mxu0 0.0
        %674 = vmatpush1.msra.mxu0 %v407
        %675 = vmatprep.subr.mxu0 0.0
        %676 = vmatpush1.msra.mxu0 0.0
        %677 = vmatprep.subr.mxu0 0.0
        %678 = vmatpush1.msra.mxu0 0.0
        %679 = vmatprep.subr.mxu0 0.0
        %680 = vmatpush1.msra.mxu0 0.0
        %681 = vmatprep.subr.mxu0 0.0
        %682 = vmatpush1.msra.mxu0 0.0
        %683 = vmatprep.subr.mxu0 0.0
        %684 = vmatpush1.msra.mxu0 0.0
        %685 = vmatprep.subr.mxu0 0.0
        %686 = vmatpush1.msra.mxu0 0.0
        %687 = vmatprep.subr.mxu0 0.0
        %688 = vmatpush1.msra.mxu0 0.0
        %689 = vmatprep.subr.mxu0 0.0
        %690 = vmatpush1.msra.mxu0 0.0
        %691 = vmatprep.subr.mxu0 0.0
        %692 = vmatpush1.msra.mxu0 0.0
        %693 = vmatprep.subr.mxu0 0.0
        %694 = vmatpush1.msra.mxu0 0.0
        %695 = vmatprep.subr.mxu0 0.0
        %696 = vmatpush1.msra.mxu0 0.0
        %697 = vmatprep.subr.mxu0 0.0
        %698 = vmatpush1.msra.mxu0 0.0
        %699 = vmatprep.subr.mxu0 0.0
        %700 = vmatpush1.msra.mxu0 0.0
        %701 = vmatprep.subr.mxu0 0.0
        %702 = vmatpush1.msra.mxu0 0.0
        %703 = vmatprep.subr.mxu0 0.0
        %704 = vmatpush1.msra.mxu0 0.0
        %705 = vmatprep.subr.mxu0 0.0
        %706 = vmatpush1.msra.mxu0 0.0
        %707 = vmatprep.mubr.f32.mxu0 0.0
        %708 = vmatmul.mubr.f32.gmra.mrb[0].mxu0 %v391
        %v709 = vpop.f32.mrb[0].mxu0
        %v710 = vadd.f32 %v640, %v709
        %v711 = vpop.f32.mrb[0].mxu0
        %712 = vdwg.mxu0
        %v713 = vld [vmem:[%s7] sm:$0x1]
        %v715 = vlaneseq
        %v716 = vshrl.u32 %v715, 7
        %v717 = vsub.s32 0, %v716
        %v718 = vrot.slane %v713, %v717
        %v720 = vadd.f32 %v710, %v718
        %vm721 = vcmask 261120
        %722 = vst.msk [vmem:[%s366] sm:$0xff] %vm721, %v720
        %s723 = sand.u32 %s233, 1
        %s724 = scalar_lea.sflag [#allocation3], %s723
        %s725 = sand.u32 %s233, 1
        %s726 = smul.addr %s725, 8
        %s727 = scalar_lea.vmem [#allocation2], %s726
        // Predicated region
        $region53: #{tpu_custom_call.1} parent=51 // pred_check
          %p728 = pneg %p243
        $region54: #{tpu_custom_call.1} parent=51 // pred_check_branch
          %730 = sbr.rel (%p728) target = $region56
        $region55: #{tpu_custom_call.1} parent=51 // pred_region
          %s732 = ssub.s32 128, 128
          %733 = vsyncadd %s724, %s732
          %s734 = smul.addr %s26, 2
          %s735 = sadd.s32 %s27, %s734
          %s736 = smul.addr %s735, 128
          %s737 = scalar_lea.hbm %s8, %s736
          %s739 = sshll.u32 %s727, 4
          %s740 = int_to_ptr.vmem [resolvable:$true] %s739
          %742 = dma.vmem_to_hbm [thread:$0]  %s740, 128, %s737, %s724
        $region56: #{tpu_custom_call.1} parent=51 // pred_fallthru
          _
      $region52: #{tpu_custom_call.1} parent=5 // pred_fallthru
        _
      %p743 = scmp.le.s32.totalorder 2, %s17
      // Predicated region
      $region57: #{tpu_custom_call.1} parent=5 // pred_check
        %p744 = pneg %p743
      $region58: #{tpu_custom_call.1} parent=5 // pred_check_branch
        %746 = sbr.rel (%p744) target = $region60
      $region59: #{tpu_custom_call.1} parent=5 // pred_region
        %s747 = ssub.s32 %s17, 2
        // Predicated region
        $region61: #{tpu_custom_call.1} parent=59 // pred_check
          %p748 = pneg %p249
        $region62: #{tpu_custom_call.1} parent=59 // pred_check_branch
          %750 = sbr.rel (%p748) target = $region64
        $region63: #{tpu_custom_call.1} parent=59 // pred_region
          %s751 = sand.u32 %s234, 1
          %s752 = scalar_lea.sflag [#allocation3], %s751
          %s753 = sand.u32 %s234, 1
          %s754 = smul.addr %s753, 8
          %s755 = scalar_lea.vmem [#allocation2], %s754
          %756 = dma.done %s752, 128
        $region64: #{tpu_custom_call.1} parent=59 // pred_fallthru
          _
      $region60: #{tpu_custom_call.1} parent=5 // pred_fallthru
        _
    $region6: #{tpu_custom_call.1} parent=1 // loop_footer
      %s21 = sadd.s32 1, %s17
    $region7: #{tpu_custom_call.1} parent=1 // loop_footer_branch
      %16 = sbr.rel target = $region3
    $region8: #{tpu_custom_call.1} parent=1 // loop_exit
      _
    %757 = vsyncpa [#allocation3], 1
    %s758 = scalar_lea.sflag [#allocation3], 1
    %759 = vsyncpa %s758, 1

</llo_original>
